<compile_context>
chip_gen: v6e
topology: v6e:2x2x1
jax: 0.10.0
libtpu: 0.0.40
codegen_flags: <defaults>
</compile_context>

<pallas_src>
import functools

import jax
import jax.numpy as jnp
from jax.experimental import pallas as pl
from jax.experimental.pallas import tpu as pltpu


def _ce_loss_kernel(logits_ref, labels_ref, weight_ref, out_ref,
                    m_ref, l_ref, p_ref,
                    *, n_rows, vocab, mask_vocab_tail, mask_row_tail):
    """Grid = (row_tiles [parallel], vocab_tiles [arbitrary, innermost])."""
    i = pl.program_id(0)
    j = pl.program_id(1)
    nv = pl.num_programs(1)
    tile_n, tile_v = logits_ref.shape

    # New row tile: reset streaming-logsumexp state.
    @pl.when(j == 0)
    def _init():
        m_ref[...] = jnp.full_like(m_ref, -jnp.inf)   # running max
        l_ref[...] = jnp.zeros_like(l_ref)            # running sum(exp)
        p_ref[...] = jnp.zeros_like(p_ref)            # picked logit

    raw = logits_ref[...]                             # native dtype (bf16 stays bf16)
    labels = labels_ref[...]                          # (tile_n, 1) int32
    col = jax.lax.broadcasted_iota(jnp.int32, (tile_n, tile_v), 1)

    # ---- gather logits[row, label[row]] --------------------------------
    # Offset hoisted onto the (tile_n,1) labels instead of the full-tile iota.
    # Exact in native dtype: at most one element per row survives the select.
    # Garbage tail columns can never match because labels < V for valid rows.
    lbl_local = labels - j * tile_v
    picked = jnp.sum(jnp.where(col == lbl_local, raw, 0),
                     axis=-1, keepdims=True)
    p_ref[...] += picked.astype(jnp.float32)

    # ---- streaming (online) logsumexp over the vocab axis (f32 path) ----
    x = raw.astype(jnp.float32)
    if mask_vocab_tail:
        # Ragged vocab tail: out-of-range columns hold unspecified data ->
        # clamp so they contribute exp(-1e30 - m) == 0 and never win the max.
        x = jnp.where(col < (vocab - j * tile_v), x, -1e30)
    m_prev = m_ref[...]
    m_new = jnp.maximum(m_prev, jnp.max(x, axis=-1, keepdims=True))
    l_ref[...] = (l_ref[...] * jnp.exp(m_prev - m_new)
                  + jnp.sum(jnp.exp(x - m_new), axis=-1, keepdims=True))
    m_ref[...] = m_new

    # ---- last vocab step: finalize per-row loss, emit tile partial sum ---
    @pl.when(j == nv - 1)
    def _finalize():
        lse = m_ref[...] + jnp.log(l_ref[...])                 # (tile_n, 1)
        weighted = (lse - p_ref[...]) * weight_ref[...]        # (tile_n, 1)
        if mask_row_tail:
            # Ragged row tail: select (not multiply) so garbage rows can't
            # poison the sum with NaN/Inf.
            row = i * tile_n + jax.lax.broadcasted_iota(jnp.int32, (tile_n, 1), 0)
            weighted = jnp.where(row < n_rows, weighted, 0.0)
        s = jnp.sum(weighted)                                  # scalar partial
        r = jax.lax.broadcasted_iota(jnp.int32, out_ref.shape, 1)
        c = jax.lax.broadcasted_iota(jnp.int32, out_ref.shape, 2)
        out_ref[...] = jnp.where((r == 0) & (c == 0), s, 0.0)


def _vmem_budgets():
    """(tile_budget_bytes, vmem_limit_bytes, max_tile_n) per chip generation."""
    cap = 64 * 1024 * 1024
    try:
        info = pltpu.get_tpu_info()
        cap = int(getattr(info, "vmem_capacity_bytes", cap))
    except Exception:
        pass
    if cap >= 128 * 1024 * 1024:
        # v5e / v6e: 128 MiB physical VMEM -> bigger tiles, fewer grid steps.
        return 16 * 1024 * 1024, 64 * 1024 * 1024, 1024
    # v7x (64 MiB physical) or unknown: stay conservative.
    return 8 * 1024 * 1024, 32 * 1024 * 1024, 512


def _choose_tiles(n_rows, vocab, itemsize, budget_bytes, max_tile_n):
    """Pick (tile_n, tile_v). No padding: ragged tails are masked in-kernel."""
    max_tile_v = 2048                      # multiple of 128
    tile_v = vocab if vocab <= max_tile_v else max_tile_v

    # Budget = double-buffered native-dtype tile + one f32 upcast temporary,
    # so the number reflects real VMEM pressure inside the kernel.
    per_row = tile_v * (2 * itemsize + 4)
    tile_n = max(8, min(max_tile_n, (budget_bytes // per_row) // 8 * 8))

    if n_rows <= 8:
        return n_rows, tile_v              # single tiny block == full row extent

    tile_n = min(tile_n, (n_rows + 7) // 8 * 8)
    # v7x megacore: guarantee >= 2 row tiles so both TensorCores get work.
    if pl.cdiv(n_rows, tile_n) < 2:
        tile_n = max(8, (((n_rows + 1) // 2) + 7) // 8 * 8)
    return tile_n, tile_v


def language_model_criterion(predictions, labels, target_mask):
    """predictions: (B, T, V) float; labels: (B, T) int; target_mask: (B, T)."""
    B, T, V = predictions.shape
    N = B * T

    logits = predictions.reshape(N, V)          # native dtype (bf16 halves HBM traffic)
    labels_flat = labels.reshape(N).astype(jnp.int32)
    mask_flat = target_mask.reshape(N).astype(jnp.float32)

    # ignore_index=0 folded into a per-row weight; denominator is sum(mask),
    # exactly like the PyTorch module (NaN for all-zero mask, intentionally).
    weight_flat = mask_flat * (labels_flat != 0).astype(jnp.float32)
    mask_sum = jnp.sum(mask_flat)

    itemsize = jnp.dtype(logits.dtype).itemsize
    tile_budget, vmem_limit, max_tile_n = _vmem_budgets()
    tile_n, tile_v = _choose_tiles(N, V, itemsize, tile_budget, max_tile_n)

    grid_n = pl.cdiv(N, tile_n)
    grid_v = pl.cdiv(V, tile_v)

    labels2d = labels_flat.reshape(N, 1)
    weight2d = weight_flat.reshape(N, 1)

    kernel = functools.partial(
        _ce_loss_kernel,
        n_rows=N,
        vocab=V,
        mask_vocab_tail=(V % tile_v != 0),
        mask_row_tail=(N % tile_n != 0),
    )

    partials = pl.pallas_call(
        kernel,
        out_shape=jax.ShapeDtypeStruct((grid_n, 8, 128), jnp.float32),
        grid_spec=pltpu.PrefetchScalarGridSpec(
            num_scalar_prefetch=0,
            grid=(grid_n, grid_v),          # vocab (reduction) axis last / innermost
            in_specs=[
                pl.BlockSpec((tile_n, tile_v), lambda i, j: (i, j)),
                pl.BlockSpec((tile_n, 1), lambda i, j: (i, 0)),
                pl.BlockSpec((tile_n, 1), lambda i, j: (i, 0)),
            ],
            out_specs=pl.BlockSpec((1, 8, 128), lambda i, j: (i, 0, 0)),
            scratch_shapes=[
                pltpu.VMEM((tile_n, 1), jnp.float32),   # running max
                pltpu.VMEM((tile_n, 1), jnp.float32),   # running sum(exp)
                pltpu.VMEM((tile_n, 1), jnp.float32),   # picked logit
            ],
        ),
        compiler_params=pltpu.CompilerParams(
            # Row tiles are independent (per-tile output blocks) -> parallel
            # (both TensorCores on v7x); vocab axis carries scratch -> arbitrary.
            dimension_semantics=("parallel", "arbitrary"),
            vmem_limit_bytes=vmem_limit,
        ),
    )(logits, labels2d, weight2d)

    # Final reduce + division in plain JAX.
    return jnp.sum(partials) / mask_sum


def _reference_loss(predictions, labels, target_mask):
    """Pure-JAX reference matching the PyTorch module."""
    B, T, V = predictions.shape
    logits = predictions.reshape(-1, V).astype(jnp.float32)
    lbl = labels.reshape(-1).astype(jnp.int32)
    msk = target_mask.reshape(-1).astype(jnp.float32)
    logz = jax.scipy.special.logsumexp(logits, axis=-1)
    picked = jnp.take_along_axis(logits, lbl[:, None], axis=-1)[:, 0]
    ce = logz - picked
    ce = jnp.where(lbl == 0, 0.0, ce)  # ignore_index=0
    return (ce * msk).sum() / msk.sum()


def _run_case(key, B, T, V):
    k1, k2, k3 = jax.random.split(key, 3)
    predictions = jax.random.normal(k1, (B, T, V), dtype=jnp.float32)
    labels = jax.random.randint(k2, (B, T), 0, V).astype(jnp.int32)
    target_mask = (jax.random.uniform(k3, (B, T)) > 0.3).astype(jnp.float32)
    target_mask = target_mask.at[0, 0].set(1.0)  # ensure mask sum > 0

    loss = language_model_criterion(predictions, labels, target_mask)
    loss = jax.block_until_ready(loss)
    ref = _reference_loss(predictions, labels, target_mask)
    if not jnp.allclose(loss, ref, rtol=1e-5, atol=1e-5):
        raise AssertionError(f"mismatch (B={B},T={T},V={V}): kernel={loss} ref={ref}")


if __name__ == "__main__":
    key = jax.random.PRNGKey(0)
    k_a, k_b = jax.random.split(key)

    # Small shapes consistent with the module (batch=2, seq=8, vocab=32).
    _run_case(k_a, B=2, T=8, V=32)
    # Exercise the ragged-tail paths (vocab > tile_v and non-divisible row count).
    _run_case(k_b, B=3, T=8, V=2100)

    print("KERNEL_OK")
</pallas_src>

<mosaic_0001>
module attributes {stable_mosaic.version = 11 : i64} {
  func.func @_ce_loss_kernel(%arg0: i32, %arg1: i32, %arg2: memref<8x32xf32, #tpu.memory_space<vmem>>, %arg3: memref<8x1xi32, #tpu.memory_space<vmem>>, %arg4: memref<8x1xf32, #tpu.memory_space<vmem>>, %arg5: memref<1x8x128xf32, #tpu.memory_space<vmem>>, %arg6: memref<8x1xf32, #tpu.memory_space<vmem>>, %arg7: memref<8x1xf32, #tpu.memory_space<vmem>>, %arg8: memref<8x1xf32, #tpu.memory_space<vmem>>) attributes {dimension_semantics = [#tpu.dimension_semantics<parallel>, #tpu.dimension_semantics<arbitrary>], iteration_bounds = array<i64: 2, 1>, scalar_prefetch = 0 : i64, scratch_operands = 3 : i64, tpu.core_type = #tpu.core_type<tc>, window_params = [{transform_indices = @transform_0, window_bounds = array<i64: 8, 32>}, {transform_indices = @transform_1, window_bounds = array<i64: 8, 1>}, {transform_indices = @transform_2, window_bounds = array<i64: 8, 1>}, {transform_indices = @transform_3, window_bounds = array<i64: 1, 8, 128>}]} {
    %c0_i32 = arith.constant 0 : i32
    %0 = arith.cmpi eq, %arg1, %c0_i32 : i32
    %1 = arith.extui %0 : i1 to i32
    %c0_i32_0 = arith.constant 0 : i32
    %2 = arith.cmpi ne, %1, %c0_i32_0 : i32
    scf.if %2 {
      %cst_21 = arith.constant 0xFF800000 : f32
      %38 = vector.broadcast %cst_21 : f32 to vector<8x1xf32>
      %c0_22 = arith.constant 0 : index
      %c0_23 = arith.constant 0 : index
      %39 = vector.load %arg6[%c0_22, %c0_23] : memref<8x1xf32, #tpu.memory_space<vmem>>, vector<8x1xf32>
      tpu.vector_store %arg6[%c0_22, %c0_23], %38 {strides = array<i32>} : memref<8x1xf32, #tpu.memory_space<vmem>>, vector<8x1xf32>,
      %cst_24 = arith.constant 0.000000e+00 : f32
      %40 = vector.broadcast %cst_24 : f32 to vector<8x1xf32>
      %c0_25 = arith.constant 0 : index
      %c0_26 = arith.constant 0 : index
      %41 = vector.load %arg7[%c0_25, %c0_26] : memref<8x1xf32, #tpu.memory_space<vmem>>, vector<8x1xf32>
      tpu.vector_store %arg7[%c0_25, %c0_26], %40 {strides = array<i32>} : memref<8x1xf32, #tpu.memory_space<vmem>>, vector<8x1xf32>,
      %cst_27 = arith.constant 0.000000e+00 : f32
      %42 = vector.broadcast %cst_27 : f32 to vector<8x1xf32>
      %c0_28 = arith.constant 0 : index
      %c0_29 = arith.constant 0 : index
      %43 = vector.load %arg8[%c0_28, %c0_29] : memref<8x1xf32, #tpu.memory_space<vmem>>, vector<8x1xf32>
      tpu.vector_store %arg8[%c0_28, %c0_29], %42 {strides = array<i32>} : memref<8x1xf32, #tpu.memory_space<vmem>>, vector<8x1xf32>,
    } else {
    }
    %c0 = arith.constant 0 : index
    %c0_1 = arith.constant 0 : index
    %3 = vector.load %arg2[%c0, %c0_1] : memref<8x32xf32, #tpu.memory_space<vmem>>, vector<8x32xf32>
    %c0_2 = arith.constant 0 : index
    %c0_3 = arith.constant 0 : index
    %4 = vector.load %arg3[%c0_2, %c0_3] : memref<8x1xi32, #tpu.memory_space<vmem>>, vector<8x1xi32>
    %5 = tpu.iota {dimensions = array<i32: 1>} : vector<8x32xi32>
    %c32_i32 = arith.constant 32 : i32
    %6 = arith.muli %arg1, %c32_i32 : i32
    %7 = vector.broadcast %6 : i32 to vector<8x1xi32>
    %8 = arith.subi %4, %7 : vector<8x1xi32>
    %9 = vector.broadcast %8 : vector<8x1xi32> to vector<8x32xi32>
    %10 = arith.cmpi eq, %5, %9 : vector<8x32xi32>
    %c0_i32_4 = arith.constant 0 : i32
    %11 = arith.sitofp %c0_i32_4 : i32 to f32
    %12 = vector.broadcast %11 : f32 to vector<8x32xf32>
    %13 = arith.select %10, %3, %12 : vector<8x32xi1>, vector<8x32xf32>
    %cst = arith.constant dense<0.000000e+00> : vector<8xf32>
    %14 = vector.multi_reduction <add>, %13, %cst [1] : vector<8x32xf32> to vector<8xf32>
    %15 = vector.shape_cast %14 : vector<8xf32> to vector<8x1xf32>
    %c0_5 = arith.constant 0 : index
    %c0_6 = arith.constant 0 : index
    %16 = vector.load %arg8[%c0_5, %c0_6] : memref<8x1xf32, #tpu.memory_space<vmem>>, vector<8x1xf32>
    %17 = arith.addf %16, %15 : vector<8x1xf32>
    %c0_7 = arith.constant 0 : index
    %c0_8 = arith.constant 0 : index
    %18 = vector.load %arg8[%c0_7, %c0_8] : memref<8x1xf32, #tpu.memory_space<vmem>>, vector<8x1xf32>
    tpu.vector_store %arg8[%c0_7, %c0_8], %17 {strides = array<i32>} : memref<8x1xf32, #tpu.memory_space<vmem>>, vector<8x1xf32>,
    %c0_9 = arith.constant 0 : index
    %c0_10 = arith.constant 0 : index
    %19 = vector.load %arg6[%c0_9, %c0_10] : memref<8x1xf32, #tpu.memory_space<vmem>>, vector<8x1xf32>
    %cst_11 = arith.constant dense<0xFF800000> : vector<8xf32>
    %20 = vector.multi_reduction <maximumf>, %3, %cst_11 [1] : vector<8x32xf32> to vector<8xf32>
    %21 = vector.shape_cast %20 : vector<8xf32> to vector<8x1xf32>
    %22 = arith.maximumf %19, %21 : vector<8x1xf32>
    %c0_12 = arith.constant 0 : index
    %c0_13 = arith.constant 0 : index
    %23 = vector.load %arg7[%c0_12, %c0_13] : memref<8x1xf32, #tpu.memory_space<vmem>>, vector<8x1xf32>
    %24 = arith.subf %19, %22 : vector<8x1xf32>
    %25 = math.exp %24 : vector<8x1xf32>
    %26 = arith.mulf %23, %25 : vector<8x1xf32>
    %27 = vector.broadcast %22 : vector<8x1xf32> to vector<8x32xf32>
    %28 = arith.subf %3, %27 : vector<8x32xf32>
    %29 = math.exp %28 : vector<8x32xf32>
    %cst_14 = arith.constant dense<0.000000e+00> : vector<8xf32>
    %30 = vector.multi_reduction <add>, %29, %cst_14 [1] : vector<8x32xf32> to vector<8xf32>
    %31 = vector.shape_cast %30 : vector<8xf32> to vector<8x1xf32>
    %32 = arith.addf %26, %31 : vector<8x1xf32>
    %c0_15 = arith.constant 0 : index
    %c0_16 = arith.constant 0 : index
    %33 = vector.load %arg7[%c0_15, %c0_16] : memref<8x1xf32, #tpu.memory_space<vmem>>, vector<8x1xf32>
    tpu.vector_store %arg7[%c0_15, %c0_16], %32 {strides = array<i32>} : memref<8x1xf32, #tpu.memory_space<vmem>>, vector<8x1xf32>,
    %c0_17 = arith.constant 0 : index
    %c0_18 = arith.constant 0 : index
    %34 = vector.load %arg6[%c0_17, %c0_18] : memref<8x1xf32, #tpu.memory_space<vmem>>, vector<8x1xf32>
    tpu.vector_store %arg6[%c0_17, %c0_18], %22 {strides = array<i32>} : memref<8x1xf32, #tpu.memory_space<vmem>>, vector<8x1xf32>,
    %c0_i32_19 = arith.constant 0 : i32
    %35 = arith.cmpi eq, %arg1, %c0_i32_19 : i32
    %36 = arith.extui %35 : i1 to i32
    %c0_i32_20 = arith.constant 0 : i32
    %37 = arith.cmpi ne, %36, %c0_i32_20 : i32
    scf.if %37 {
      %c0_21 = arith.constant 0 : index
      %c0_22 = arith.constant 0 : index
      %38 = vector.load %arg6[%c0_21, %c0_22] : memref<8x1xf32, #tpu.memory_space<vmem>>, vector<8x1xf32>
      %c0_23 = arith.constant 0 : index
      %c0_24 = arith.constant 0 : index
      %39 = vector.load %arg7[%c0_23, %c0_24] : memref<8x1xf32, #tpu.memory_space<vmem>>, vector<8x1xf32>
      %40 = math.log %39 : vector<8x1xf32>
      %41 = arith.addf %38, %40 : vector<8x1xf32>
      %c0_25 = arith.constant 0 : index
      %c0_26 = arith.constant 0 : index
      %42 = vector.load %arg8[%c0_25, %c0_26] : memref<8x1xf32, #tpu.memory_space<vmem>>, vector<8x1xf32>
      %43 = arith.subf %41, %42 : vector<8x1xf32>
      %c0_27 = arith.constant 0 : index
      %c0_28 = arith.constant 0 : index
      %44 = vector.load %arg4[%c0_27, %c0_28] : memref<8x1xf32, #tpu.memory_space<vmem>>, vector<8x1xf32>
      %45 = arith.mulf %43, %44 : vector<8x1xf32>
      %46 = vector.shape_cast %45 : vector<8x1xf32> to vector<1x8x1xf32>
      %cst_29 = arith.constant dense<0.000000e+00> : vector<1xf32>
      %47 = vector.multi_reduction <add>, %46, %cst_29 [1, 2] : vector<1x8x1xf32> to vector<1xf32>
      %48 = vector.shape_cast %47 : vector<1xf32> to vector<1x1x1xf32>
      %49 = vector.extract %48[0, 0, 0] : f32 from vector<1x1x1xf32>
      %50 = tpu.iota {dimensions = array<i32: 1>} : vector<1x8x128xi32>
      %51 = tpu.iota {dimensions = array<i32: 2>} : vector<1x8x128xi32>
      %c0_i32_30 = arith.constant 0 : i32
      %52 = vector.broadcast %c0_i32_30 : i32 to vector<1x8x128xi32>
      %53 = arith.cmpi eq, %50, %52 : vector<1x8x128xi32>
      %c0_i32_31 = arith.constant 0 : i32
      %54 = vector.broadcast %c0_i32_31 : i32 to vector<1x8x128xi32>
      %55 = arith.cmpi eq, %51, %54 : vector<1x8x128xi32>
      %56 = arith.andi %53, %55 : vector<1x8x128xi1>
      %cst_32 = arith.constant 0.000000e+00 : f32
      %57 = vector.broadcast %49 : f32 to vector<1x8x128xf32>
      %58 = vector.broadcast %cst_32 : f32 to vector<1x8x128xf32>
      %59 = arith.select %56, %57, %58 : vector<1x8x128xi1>, vector<1x8x128xf32>
      %c0_33 = arith.constant 0 : index
      %c0_34 = arith.constant 0 : index
      %c0_35 = arith.constant 0 : index
      %60 = vector.load %arg5[%c0_33, %c0_34, %c0_35] : memref<1x8x128xf32, #tpu.memory_space<vmem>>, vector<1x8x128xf32>
      tpu.vector_store %arg5[%c0_33, %c0_34, %c0_35], %59 {strides = array<i32>} : memref<1x8x128xf32, #tpu.memory_space<vmem>>, vector<1x8x128xf32>,
    } else {
    }
    return
  }
  func.func @transform_0(%arg0: i32, %arg1: i32) -> (i32, i32) {
    %c0_i32 = arith.constant 0 : i32
    return %arg0, %arg1 : i32, i32
  }
  func.func @transform_1(%arg0: i32, %arg1: i32) -> (i32, i32) {
    %c0_i32 = arith.constant 0 : i32
    %c0_i32_0 = arith.constant 0 : i32
    return %arg0, %c0_i32 : i32, i32
  }
  func.func @transform_2(%arg0: i32, %arg1: i32) -> (i32, i32) {
    %c0_i32 = arith.constant 0 : i32
    %c0_i32_0 = arith.constant 0 : i32
    return %arg0, %c0_i32 : i32, i32
  }
  func.func @transform_3(%arg0: i32, %arg1: i32) -> (i32, i32, i32) {
    %c0_i32 = arith.constant 0 : i32
    %c0_i32_0 = arith.constant 0 : i32
    %c0_i32_1 = arith.constant 0 : i32
    return %arg0, %c0_i32, %c0_i32_0 : i32, i32, i32
  }
}

</mosaic_0001>

<llo_original>
// kernel: tpu_custom_call.1
$region0: #{tpu_custom_call.1}
  #allocation0 [shape = 'u32[]', space=smem, size = 0x4, offset = 0x4, fixed_abs, tag = 'smem constant byte address 0x4 - core index']
  #allocation1 [shape = 'u32[144,128]{1,0:T(1,128)}', space=vmem, size = 0x12000, scoped, tag = 'internal scratch']
  #allocation2 [shape = 'f32[8,1]{1,0:T(8,128)}', space=vmem, size = 0x1000, scoped, tag = 'scratch operand']
  #allocation3 [shape = 'f32[8,1]{1,0:T(8,128)}', space=vmem, size = 0x1000, scoped, tag = 'scratch operand']
  #allocation4 [shape = 'f32[8,1]{1,0:T(8,128)}', space=vmem, size = 0x1000, scoped, tag = 'scratch operand']
  %s0 = inlined_call_operand.vmem [shape: f32[16,32], index: 0, kind: input, shape index: {}]
  %s1 = inlined_call_operand.vmem [shape: s32[16,1], index: 1, kind: input, shape index: {}]
  %s2 = inlined_call_operand.vmem [shape: f32[16,1], index: 2, kind: input, shape index: {}]
  %s3 = inlined_call_operand.hbm [shape: f32[2,8,128], index: 3, kind: output, shape index: {}]
  %s4 = sld [smem:[#allocation0]]
  $region53: #{tpu_custom_call.1} parent=0
    _
  %s6 = ssub.s32 1, %s4
  %s7 = scalar_select 0, %s6, %s4
  $region1: #{tpu_custom_call.1} parent=0
    #allocation5 [shape = 'u8[8192]{0}', space=vmem, size = 0x2000, scoped, tag = 'output window, operand 0']
    #allocation6 [shape = 's32[2]{0}', space=sflag, size = 0x8, scoped, tag = 'scoped memory for tpu_custom_call.1']
    %8 = vsyncpa [#allocation6], 0
    %s9 = scalar_lea.sflag [#allocation6], 1
    %10 = vsyncpa %s9, 0
    loop: start=0, step=1, limit=4
    $region2: #{tpu_custom_call.1} parent=1 // loop_pre_header
      _
    $region3: #{tpu_custom_call.1} parent=1 // loop_header
      %s12 = sphi 0, %s16
      %p13 = scmp.ge.s32.totalorder %s12, 4
      %s19 = sphi 0, %s31
      %s20 = sphi 0, %s27
      %s21 = sphi 0, %s19
      %s22 = sphi 0, %s20
      %s23 = sphi 0, %s21
      %s24 = sphi 0, %s22
      %s36 = sphi 0, %s38
      %s39 = sphi 0, %s36
      %s40 = sphi 0, %s39
      %s56 = sphi 0, %s40
      %s62 = sphi 0, %s64
      %s65 = sphi 0, %s62
      %s66 = sphi 0, %s65
      %s82 = sphi 0, %s66
      %s88 = sphi 0, %s90
      %s91 = sphi 0, %s88
      %s92 = sphi 0, %s91
      %s108 = sphi 0, %s92
      %s114 = sphi 0, %s116
      %s117 = sphi 0, %s114
      %s118 = sphi 0, %s117
      %s134 = sphi 0, %s118
    $region4: #{tpu_custom_call.1} parent=1 // loop_header_branch
      %15 = sbr.rel (%p13) target = $region8
    $region5: #{tpu_custom_call.1} parent=1 // loop_body
      %s17 = ssub.s32 %s12, 1
      %s18 = ssub.s32 %s12, 2
      %s25 = sadd.s32 1, %s20
      %p26 = scmp.ge.s32.totalorder %s25, 1
      %s27 = scalar_select %p26, 0, %s25
      %s28 = sadd.s32 1, %s19
      %s29 = scalar_select %p26, %s28, %s19
      %p30 = scmp.ge.s32.totalorder %s29, 2
      %s31 = scalar_select %p30, 0, %s29
      %s32 = ssub.s32 %s19, %s31
      %s33 = ssub.s32 %s20, %s27
      %s34 = sor.u32 %s32, %s33
      %p35 = scmp.eq.s32.totalorder %s34, 0
      %s37 = sadd.s32 %s36, 1
      %s38 = scalar_select %p35, %s36, %s37
      %p41 = pneg %p35
      %p42 = scmp.eq.s32.totalorder %s12, 1
      %p43 = por %p41, %p42
      %p44 = scmp.ne.s32.totalorder %s36, %s39
      %p45 = scmp.eq.s32.totalorder %s12, 0
      %p46 = por %p44, %p45
      %p47 = scmp.ne.s32.totalorder %s36, %s39
      %p48 = scmp.eq.s32.totalorder %s17, 1
      %p49 = por %p47, %p48
      %p50 = scmp.ne.s32.totalorder %s39, %s40
      %p51 = scmp.eq.s32.totalorder %s17, 0
      %p52 = por %p50, %p51
      %p53 = scmp.ne.s32.totalorder %s39, %s40
      %p54 = scmp.eq.s32.totalorder %s18, 1
      %p55 = por %p53, %p54
      %p57 = scmp.ne.s32.totalorder %s40, %s56
      %p58 = scmp.eq.s32.totalorder %s18, 0
      %p59 = por %p57, %p58
      %s60 = ssub.s32 %s19, %s31
      %p61 = scmp.eq.s32.totalorder %s60, 0
      %s63 = sadd.s32 %s62, 1
      %s64 = scalar_select %p61, %s62, %s63
      %p67 = pneg %p61
      %p68 = scmp.eq.s32.totalorder %s12, 1
      %p69 = por %p67, %p68
      %p70 = scmp.ne.s32.totalorder %s62, %s65
      %p71 = scmp.eq.s32.totalorder %s12, 0
      %p72 = por %p70, %p71
      %p73 = scmp.ne.s32.totalorder %s62, %s65
      %p74 = scmp.eq.s32.totalorder %s17, 1
      %p75 = por %p73, %p74
      %p76 = scmp.ne.s32.totalorder %s65, %s66
      %p77 = scmp.eq.s32.totalorder %s17, 0
      %p78 = por %p76, %p77
      %p79 = scmp.ne.s32.totalorder %s65, %s66
      %p80 = scmp.eq.s32.totalorder %s18, 1
      %p81 = por %p79, %p80
      %p83 = scmp.ne.s32.totalorder %s66, %s82
      %p84 = scmp.eq.s32.totalorder %s18, 0
      %p85 = por %p83, %p84
      %s86 = ssub.s32 %s19, %s31
      %p87 = scmp.eq.s32.totalorder %s86, 0
      %s89 = sadd.s32 %s88, 1
      %s90 = scalar_select %p87, %s88, %s89
      %p93 = pneg %p87
      %p94 = scmp.eq.s32.totalorder %s12, 1
      %p95 = por %p93, %p94
      %p96 = scmp.ne.s32.totalorder %s88, %s91
      %p97 = scmp.eq.s32.totalorder %s12, 0
      %p98 = por %p96, %p97
      %p99 = scmp.ne.s32.totalorder %s88, %s91
      %p100 = scmp.eq.s32.totalorder %s17, 1
      %p101 = por %p99, %p100
      %p102 = scmp.ne.s32.totalorder %s91, %s92
      %p103 = scmp.eq.s32.totalorder %s17, 0
      %p104 = por %p102, %p103
      %p105 = scmp.ne.s32.totalorder %s91, %s92
      %p106 = scmp.eq.s32.totalorder %s18, 1
      %p107 = por %p105, %p106
      %p109 = scmp.ne.s32.totalorder %s92, %s108
      %p110 = scmp.eq.s32.totalorder %s18, 0
      %p111 = por %p109, %p110
      %s112 = ssub.s32 %s19, %s31
      %p113 = scmp.eq.s32.totalorder %s112, 0
      %s115 = sadd.s32 %s114, 1
      %s116 = scalar_select %p113, %s114, %s115
      %p119 = pneg %p113
      %p120 = scmp.eq.s32.totalorder %s12, 1
      %p121 = por %p119, %p120
      %p122 = scmp.ne.s32.totalorder %s114, %s117
      %p123 = scmp.eq.s32.totalorder %s12, 0
      %p124 = por %p122, %p123
      %p125 = scmp.ne.s32.totalorder %s114, %s117
      %p126 = scmp.eq.s32.totalorder %s17, 1
      %p127 = por %p125, %p126
      %p128 = scmp.ne.s32.totalorder %s117, %s118
      %p129 = scmp.eq.s32.totalorder %s17, 0
      %p130 = por %p128, %p129
      %p131 = scmp.ne.s32.totalorder %s117, %s118
      %p132 = scmp.eq.s32.totalorder %s18, 1
      %p133 = por %p131, %p132
      %p135 = scmp.ne.s32.totalorder %s118, %s134
      %p136 = scmp.eq.s32.totalorder %s18, 0
      %p137 = por %p135, %p136
      %p138 = scmp.le.s32.totalorder 1, %s12
      %p139 = scmp.lt.s32.totalorder %s12, 3
      %p140 = pnand %p138, %p139
      %p141 = pneg %p140
      // Predicated region
      $region9: #{tpu_custom_call.1} parent=5 // pred_check
        _
      $region10: #{tpu_custom_call.1} parent=5 // pred_check_branch
        %143 = sbr.rel (%p140) target = $region12
      $region11: #{tpu_custom_call.1} parent=5 // pred_region
        %s144 = ssub.s32 %s12, 1
      $region12: #{tpu_custom_call.1} parent=5 // pred_fallthru
        _
      %p145 = scmp.lt.s32.totalorder %s12, 2
      // Predicated region
      $region13: #{tpu_custom_call.1} parent=5 // pred_check
        %p146 = pneg %p145
      $region14: #{tpu_custom_call.1} parent=5 // pred_check_branch
        %148 = sbr.rel (%p146) target = $region16
      $region15: #{tpu_custom_call.1} parent=5 // pred_region
        // Predicated region
        $region17: #{tpu_custom_call.1} parent=15 // pred_check
          %p149 = pneg %p46
        $region18: #{tpu_custom_call.1} parent=15 // pred_check_branch
          %151 = sbr.rel (%p149) target = $region20
        $region19: #{tpu_custom_call.1} parent=15 // pred_region
          %p152 = scmp.lt.s32.totalorder %s19, 1
          %s153 = scalar_select %p152, %s19, 1
          %p154 = scmp.lt.s32.totalorder %s20, 0
          %s155 = scalar_select %p154, %s20, 0
          %s156 = sadd.s32 %s155, %s153
          %s157 = smul.addr %s156, 8
          %s158 = scalar_lea.vmem %s0, %s157
        $region20: #{tpu_custom_call.1} parent=15 // pred_fallthru
          _
        // Predicated region
        $region21: #{tpu_custom_call.1} parent=15 // pred_check
          %p159 = pneg %p72
        $region22: #{tpu_custom_call.1} parent=15 // pred_check_branch
          %161 = sbr.rel (%p159) target = $region24
        $region23: #{tpu_custom_call.1} parent=15 // pred_region
          %p162 = scmp.lt.s32.totalorder %s19, 1
          %s163 = scalar_select %p162, %s19, 1
          %s164 = smul.addr %s163, 8
          %s165 = scalar_lea.vmem %s1, %s164
        $region24: #{tpu_custom_call.1} parent=15 // pred_fallthru
          _
        // Predicated region
        $region25: #{tpu_custom_call.1} parent=15 // pred_check
          %p166 = pneg %p98
        $region26: #{tpu_custom_call.1} parent=15 // pred_check_branch
          %168 = sbr.rel (%p166) target = $region28
        $region27: #{tpu_custom_call.1} parent=15 // pred_region
          %p169 = scmp.lt.s32.totalorder %s19, 1
          %s170 = scalar_select %p169, %s19, 1
          %s171 = smul.addr %s170, 8
          %s172 = scalar_lea.vmem %s2, %s171
        $region28: #{tpu_custom_call.1} parent=15 // pred_fallthru
          _
      $region16: #{tpu_custom_call.1} parent=5 // pred_fallthru
        _
      %p173 = scmp.le.s32.totalorder 1, %s12
      %p174 = scmp.lt.s32.totalorder %s12, 3
      %p175 = pnand %p173, %p174
      %p176 = pneg %p175
      // Predicated region
      $region29: #{tpu_custom_call.1} parent=5 // pred_check
        _
      $region30: #{tpu_custom_call.1} parent=5 // pred_check_branch
        %178 = sbr.rel (%p175) target = $region32
      $region31: #{tpu_custom_call.1} parent=5 // pred_region
        %s179 = ssub.s32 %s12, 1
        %p180 = scmp.lt.s32.totalorder %s21, 1
        %s181 = scalar_select %p180, %s21, 1
        %p182 = scmp.lt.s32.totalorder %s22, 0
        %s183 = scalar_select %p182, %s22, 0
        %s184 = sadd.s32 %s183, %s181
        %s185 = smul.addr %s184, 8
        %s186 = scalar_lea.vmem %s0, %s185
        %p187 = pneg %p52
        %p188 = pneg %p49
        %p189 = scmp.lt.s32.totalorder %s21, 1
        %s190 = scalar_select %p189, %s21, 1
        %s191 = smul.addr %s190, 8
        %s192 = scalar_lea.vmem %s1, %s191
        %p193 = pneg %p78
        %p194 = pneg %p75
        %p195 = scmp.lt.s32.totalorder %s21, 1
        %s196 = scalar_select %p195, %s21, 1
        %s197 = smul.addr %s196, 8
        %s198 = scalar_lea.vmem %s2, %s197
        %p199 = pneg %p104
        %p200 = pneg %p101
        %p201 = pneg %p130
        %p202 = pneg %p127
        %s203 = sand.u32 %s117, 1
        %s204 = scalar_lea.sflag [#allocation6], %s203
        %s205 = sand.u32 %s117, 1
        %s206 = smul.addr %s205, 8
        %s207 = scalar_lea.vmem [#allocation5], %s206
        %p208 = scmp.lt.s32.totalorder %s21, 1
        %s209 = scalar_select %p208, %s21, 1
        %p210 = scmp.lt.s32.totalorder %s22, 0
        %s211 = scalar_select %p210, %s22, 0
        %s212 = sadd.s32 %s211, %s209
        %s213 = smul.addr %s212, 8
        %s214 = scalar_lea.vmem %s0, %s213
        %p215 = scmp.lt.s32.totalorder %s21, 1
        %s216 = scalar_select %p215, %s21, 1
        %s217 = smul.addr %s216, 8
        %s218 = scalar_lea.vmem %s1, %s217
        %p219 = scmp.lt.s32.totalorder %s21, 1
        %s220 = scalar_select %p219, %s21, 1
        %s221 = smul.addr %s220, 8
        %s222 = scalar_lea.vmem %s2, %s221
        %p223 = scmp.eq.s32.totalorder %s22, 0
        // Predicated region
        $region33: #{tpu_custom_call.1} parent=31 // pred_check
          %p224 = pneg %p223
        $region34: #{tpu_custom_call.1} parent=31 // pred_check_branch
          %226 = sbr.rel (%p224) target = $region36
        $region35: #{tpu_custom_call.1} parent=31 // pred_region
          %vm227 = vcmask 7168
          %228 = vst.msk [vmem:[#allocation2] sm:$0xff] %vm227, -inf
          %229 = vst.msk [vmem:[#allocation3] sm:$0xff] %vm227, 0.0
          %230 = vst.msk [vmem:[#allocation4] sm:$0xff] %vm227, 0.0
        $region36: #{tpu_custom_call.1} parent=31 // pred_fallthru
          _
        %v231 = vld [vmem:[%s214] sm:$0xff]
        %v232 = vld [vmem:[%s218] sm:$0xff]
        %v233 = vlaneseq
        %v234 = vand.u32 %v233, 127
        %s235 = smul.u32 %s22, 32
        %v236 = vstv %s235
        %v237 = vsub.s32 %v232, %v236
        %238 = vset.pattern.permute.xlu0 0
        %239 = vperm.xlu0 %238, %v237
        %v240 = vpop.permute.xlu0 %239
        %vm241 = vcmp.eq.s32.totalorder %v234, %v240
        %v242 = vsel %vm241, %v231, 0.0
        %vm243 = vcmask 261120
        %v244 = vsel %vm243, %v242, 0.0
        %245 = vadd.xlane.f32.xlu0 %v244
        %v246 = vpop.xlane.xlu0 %245
        %v247 = vld [vmem:[#allocation4] sm:$0xff]
        %v248 = vadd.f32 %v247, %v246
        %vm249 = vcmask 7168
        %250 = vst.msk [vmem:[#allocation4] sm:$0xff] %vm249, %v248
        %v251 = vld [vmem:[#allocation2] sm:$0xff]
        %v252 = vsel %vm243, %v231, -inf
        %253 = vmax.xlane.f32.xlu0 %v252
        %v254 = vpop.xlane.xlu0 %253
        %v255 = vmax.f32 %v251, %v254
        %v256 = vld [vmem:[#allocation3] sm:$0xff]
        %v257 = vsub.f32 %v251, %v255
        %v258 = vmul.f32 %v257, 1.442695
        %v259 = vpow.pop %v258
        %v260 = vmul.f32 %v256, %v259
        %262 = vset.pattern.permute.xlu0 0
        %263 = vperm.xlu0 %262, %v255
        %v264 = vpop.permute.xlu0 %263
        %v266 = vsub.f32 %v231, %v264
        %v267 = vmul.f32 %v266, 1.442695
        %v268 = vpow.pop %v267
        %v269 = vsel %vm243, %v268, 0.0
        %270 = vadd.xlane.f32.xlu0 %v269
        %v271 = vpop.xlane.xlu0 %270
        %v272 = vadd.f32 %v260, %v271
        %273 = vst.msk [vmem:[#allocation3] sm:$0xff] %vm249, %v272
        %274 = vst.msk [vmem:[#allocation2] sm:$0xff] %vm249, %v255
        // Predicated region
        $region37: #{tpu_custom_call.1} parent=31 // pred_check
          %p275 = pneg %p223
        $region38: #{tpu_custom_call.1} parent=31 // pred_check_branch
          %277 = sbr.rel (%p275) target = $region40
        $region39: #{tpu_custom_call.1} parent=31 // pred_region
          %v278 = vld [vmem:[#allocation2] sm:$0xff]
          %v279 = vld [vmem:[#allocation3] sm:$0xff]
          %v280 = vlog2.pop %v279
          %v281 = vmul.f32 %v280, 0.6931472
          %v282 = vadd.f32 %v278, %v281
          %v283 = vld [vmem:[#allocation4] sm:$0xff]
          %v284 = vsub.f32 %v282, %v283
          %v285 = vld [vmem:[%s222] sm:$0xff]
          %v286 = vmul.f32 %v284, %v285
          %v287 = vsel %vm249, %v286, 0.0
          %288 = vadd.xlane.f32.xlu0 %v287
          %v289 = vpop.xlane.xlu0 %288
          %v290 = vrot.slane %v289, 4
          %v291 = vadd.f32 %v289, %v290
          %v292 = vrot.slane %v291, 2
          %v293 = vadd.f32 %v291, %v292
          %v294 = vrot.slane %v293, 1
          %v295 = vadd.f32 %v293, %v294
          %s296 = vtos %v295
          %v297 = vlaneseq
          %v298 = vshrl.u32 %v297, 7
          %vm299 = vcmp.eq.s32.totalorder %v298, 0
          %vm300 = vcmp.eq.s32.totalorder %v234, 0
          %vm301 = vmand %vm299, %vm300
          %v302 = vstv %s296
          %v303 = vsel %vm301, %v302, 0.0
          %304 = vst [vmem:[%s207] sm:$0xff] %v303
        $region40: #{tpu_custom_call.1} parent=31 // pred_fallthru
          _
        %s305 = sand.u32 %s117, 1
        %s306 = scalar_lea.sflag [#allocation6], %s305
        %s307 = sand.u32 %s117, 1
        %s308 = smul.addr %s307, 8
        %s309 = scalar_lea.vmem [#allocation5], %s308
        // Predicated region
        $region41: #{tpu_custom_call.1} parent=31 // pred_check
          %p310 = pneg %p127
        $region42: #{tpu_custom_call.1} parent=31 // pred_check_branch
          %312 = sbr.rel (%p310) target = $region44
        $region43: #{tpu_custom_call.1} parent=31 // pred_region
          %s314 = ssub.s32 128, 128
          %315 = vsyncadd %s306, %s314
          %s316 = smul.addr %s21, 128
          %s317 = scalar_lea.hbm %s3, %s316
          %s319 = sshll.u32 %s309, 4
          %s320 = int_to_ptr.vmem [resolvable:$true] %s319
          %322 = dma.vmem_to_hbm [thread:$0]  %s320, 128, %s317, %s306
        $region44: #{tpu_custom_call.1} parent=31 // pred_fallthru
          _
      $region32: #{tpu_custom_call.1} parent=5 // pred_fallthru
        _
      %p323 = scmp.le.s32.totalorder 2, %s12
      // Predicated region
      $region45: #{tpu_custom_call.1} parent=5 // pred_check
        %p324 = pneg %p323
      $region46: #{tpu_custom_call.1} parent=5 // pred_check_branch
        %326 = sbr.rel (%p324) target = $region48
      $region47: #{tpu_custom_call.1} parent=5 // pred_region
        %s327 = ssub.s32 %s12, 2
        // Predicated region
        $region49: #{tpu_custom_call.1} parent=47 // pred_check
          %p328 = pneg %p133
        $region50: #{tpu_custom_call.1} parent=47 // pred_check_branch
          %330 = sbr.rel (%p328) target = $region52
        $region51: #{tpu_custom_call.1} parent=47 // pred_region
          %s331 = sand.u32 %s118, 1
          %s332 = scalar_lea.sflag [#allocation6], %s331
          %s333 = sand.u32 %s118, 1
          %s334 = smul.addr %s333, 8
          %s335 = scalar_lea.vmem [#allocation5], %s334
          %336 = dma.done %s332, 128
        $region52: #{tpu_custom_call.1} parent=47 // pred_fallthru
          _
      $region48: #{tpu_custom_call.1} parent=5 // pred_fallthru
        _
    $region6: #{tpu_custom_call.1} parent=1 // loop_footer
      %s16 = sadd.s32 1, %s12
    $region7: #{tpu_custom_call.1} parent=1 // loop_footer_branch
      %11 = sbr.rel target = $region3
    $region8: #{tpu_custom_call.1} parent=1 // loop_exit
      _
    %337 = vsyncpa [#allocation6], 1
    %s338 = scalar_lea.sflag [#allocation6], 1
    %339 = vsyncpa %s338, 1

</llo_original>
